<compile_context>
chip_gen: v5e
topology: v5e:2x2
jax: 0.10.0
libtpu: 0.0.40
codegen_flags: <defaults>
</compile_context>

<pallas_src>
import jax
import jax.numpy as jnp
import numpy as np
from jax.experimental import pallas as pl
from jax.experimental.pallas import tpu as pltpu


def _round_up(v, m):
    return (v + m - 1) // m * m


def _pool_matmul_kernel(x_ref, p_ref, o_ref):
    """One grid step: (tm, G*2W) packed rows @ resident pool matrix -> (tm, G*Wo).

    All 2x2 taps and the 0.25 scale live in the constant pool matrix, so the
    step is a single MXU matmul with f32 accumulation.
    NOTE: rows of the last (partial) grid block that fall past M read
    undefined data and produce garbage, but their output rows are out of
    bounds and dropped by Pallas -- do NOT add any cross-row reduction here.
    """
    o_ref[...] = jnp.dot(
        x_ref[...], p_ref[...], preferred_element_type=jnp.float32
    ).astype(o_ref.dtype)


def _choose_pack(m_rows, two_w):
    """Packing factor G: G adjacent row-pairs per matrix row to densify lanes."""
    if two_w >= 128 or m_rows < 2:
        return 1
    cap = min(m_rows, max(1, 1024 // two_w))     # keep the pool matrix small
    dense, wide = [], []
    for g in range(1, cap + 1):
        if m_rows % g:                           # need a contiguous reshape
            continue
        if (g * two_w) % 128 == 0:
            dense.append(g)
        elif g * two_w >= 128:
            wide.append(g)
    for g in dense:                              # lane-dense AND >=16 rows left
        if m_rows // g >= 16:
            return g
    if dense:
        return dense[0]
    for g in wide:
        if m_rows // g >= 16:
            return g
    return 1


def _build_pool_matrix(width_even, group, dtype):
    """Block-diagonal (G*2W, G*Wo): 0.25 at the four taps feeding each output col."""
    wo = width_even // 2
    two_w = 2 * width_even
    p = np.zeros((group * two_w, group * wo), dtype=np.float32)
    r = np.arange(two_w)
    taps = (r % width_even) // 2                 # output column fed by element r
    for g in range(group):
        p[g * two_w + r, g * wo + taps] = 0.25
    return jnp.asarray(p, dtype=dtype)


def avg_pool_2x2(x: jnp.ndarray, *, vmem_budget_bytes: int = 12 * 1024 * 1024) -> jnp.ndarray:
    """AvgPool2d(kernel_size=2, stride=2) on an NCHW tensor via Pallas."""
    N, C, H, W = x.shape
    Ho, Wo = H // 2, W // 2
    assert Ho > 0 and Wo > 0, "spatial dims too small for 2x2/2 pooling"
    He, We = 2 * Ho, 2 * Wo
    if (He, We) != (H, W):
        # Match PyTorch AvgPool2d(2, 2): odd trailing row/column is dropped.
        x = x[:, :, :He, :We]

    itemsize = x.dtype.itemsize
    sublane = max(8, 32 // itemsize)             # 8 f32 / 16 bf16 / 32 int8
    m_total = N * C * Ho                         # one pooled output row per row-pair
    two_w = 2 * We

    group = _choose_pack(m_total, two_w)
    m_rows = m_total // group
    k = group * two_w                            # input lane dim
    wo_g = group * Wo                            # output lane dim

    # ---- rows per step, budgeted on the PADDED, double-buffered footprint ----
    lanes_in = _round_up(k, 128)
    lanes_out = _round_up(wo_g, 128)
    pool_bytes = 2 * _round_up(k, sublane) * _round_up(wo_g, 128) * itemsize
    row_bytes = 2 * (lanes_in + lanes_out) * itemsize   # in + out, double-buffered
    budget = max(vmem_budget_bytes - pool_bytes, row_bytes * sublane)
    tm = max(budget // row_bytes // sublane * sublane, sublane)
    if tm >= m_rows:
        tm = m_rows                              # full-dim block is always legal
        if m_rows >= 2 * sublane:
            # Split so both v7x TensorCores get work under "parallel".
            tm = _round_up(pl.cdiv(m_rows, 2), sublane)

    grid = pl.cdiv(m_rows, tm)
    if grid > 2 and grid % 2 == 1:
        # Prefer an even step count so the two v7x cores stay balanced.
        tm_alt = _round_up(pl.cdiv(m_rows, grid + 1), sublane)
        if tm_alt >= sublane:
            tm, grid = tm_alt, pl.cdiv(m_rows, tm_alt)

    x2 = x.reshape(m_rows, k)                    # contiguous view of NCHW
    pool = _build_pool_matrix(We, group, x.dtype)

    cost = pl.CostEstimate(
        flops=2 * m_rows * k * wo_g,
        transcendentals=0,
        bytes_accessed=int((m_rows * (k + wo_g) + k * wo_g) * itemsize),
    )

    out2 = pl.pallas_call(
        _pool_matmul_kernel,
        out_shape=jax.ShapeDtypeStruct((m_rows, wo_g), x.dtype),
        grid=(grid,),
        in_specs=[
            pl.BlockSpec((tm, k), lambda i: (i, 0)),
            pl.BlockSpec((k, wo_g), lambda i: (0, 0)),   # resident, DMA'd once
        ],
        out_specs=pl.BlockSpec((tm, wo_g), lambda i: (i, 0)),
        compiler_params=pltpu.CompilerParams(
            dimension_semantics=("parallel",),
        ),
        cost_estimate=cost,
    )(x2, pool)

    return out2.reshape(N, C, Ho, Wo)


def transition_forward(x_others):
    """Pallas equivalent of _Transition.forward: pool x, pass `others` through."""
    x, others = x_others
    return (avg_pool_2x2(x), others)


if __name__ == "__main__":
    key = jax.random.PRNGKey(0)
    kx, ko = jax.random.split(key)

    N, C, H, W = 2, 4, 16, 16
    x = jax.random.normal(kx, (N, C, H, W), dtype=jnp.float32)
    # `others` is an opaque passthrough in the PyTorch module.
    others = jax.random.normal(ko, (N, C), dtype=jnp.float32)

    pooled, others_out = transition_forward((x, others))
    pooled = jax.block_until_ready(pooled)
    others_out = jax.block_until_ready(others_out)

    # Pure-JAX reference for AvgPool2d(2, 2) on NCHW.
    ref = x.reshape(N, C, H // 2, 2, W // 2, 2).mean(axis=(3, 5))
    assert pooled.shape == (N, C, H // 2, W // 2)
    assert pooled.dtype == x.dtype
    np.testing.assert_allclose(np.asarray(pooled), np.asarray(ref),
                               rtol=1e-5, atol=1e-5)
    np.testing.assert_array_equal(np.asarray(others_out), np.asarray(others))

    # Odd spatial dims: PyTorch AvgPool2d(2, 2) floors (drops trailing row/col).
    x_odd = jax.random.normal(kx, (2, 3, 7, 9), dtype=jnp.float32)
    pooled_odd = jax.block_until_ready(avg_pool_2x2(x_odd))
    ref_odd = x_odd[:, :, :6, :8].reshape(2, 3, 3, 2, 4, 2).mean(axis=(3, 5))
    np.testing.assert_allclose(np.asarray(pooled_odd), np.asarray(ref_odd),
                               rtol=1e-5, atol=1e-5)

    print("KERNEL_OK")
</pallas_src>

<mosaic_0001>
module attributes {stable_mosaic.version = 11 : i64} {
  func.func @_pool_matmul_kernel(%arg0: i32, %arg1: memref<8x128xf32, #tpu.memory_space<vmem>>, %arg2: memref<128x32xf32, #tpu.memory_space<vmem>>, %arg3: memref<8x32xf32, #tpu.memory_space<vmem>>) attributes {dimension_semantics = [#tpu.dimension_semantics<parallel>], iteration_bounds = array<i64: 2>, scalar_prefetch = 0 : i64, scratch_operands = 0 : i64, tpu.core_type = #tpu.core_type<tc>, window_params = [{transform_indices = @transform_0, window_bounds = array<i64: 8, 128>}, {pipeline_mode = #tpu.pipeline_mode<synchronous>, transform_indices = @transform_1, window_bounds = array<i64: 128, 32>}, {transform_indices = @transform_2, window_bounds = array<i64: 8, 32>}]} {
    %c0 = arith.constant 0 : index
    %c0_0 = arith.constant 0 : index
    %0 = vector.load %arg1[%c0, %c0_0] : memref<8x128xf32, #tpu.memory_space<vmem>>, vector<8x128xf32>
    %c0_1 = arith.constant 0 : index
    %c0_2 = arith.constant 0 : index
    %1 = vector.load %arg2[%c0_1, %c0_2] : memref<128x32xf32, #tpu.memory_space<vmem>>, vector<128x32xf32>
    %cst = arith.constant dense<0.000000e+00> : vector<8x32xf32>
    %2 = tpu.matmul %0, %1, %cst {dimension_numbers = #tpu.dot_dimension_numbers<[1], [0], [0], [1], [0, 0, 1, 1], [], []>} : vector<8x128xf32>, vector<128x32xf32>, vector<8x32xf32> -> vector<8x32xf32>
    %c0_3 = arith.constant 0 : index
    %c0_4 = arith.constant 0 : index
    %3 = vector.load %arg3[%c0_3, %c0_4] : memref<8x32xf32, #tpu.memory_space<vmem>>, vector<8x32xf32>
    tpu.vector_store %arg3[%c0_3, %c0_4], %2 {strides = array<i32>} : memref<8x32xf32, #tpu.memory_space<vmem>>, vector<8x32xf32>,
    return
  }
  func.func @transform_0(%arg0: i32) -> (i32, i32) {
    %c0_i32 = arith.constant 0 : i32
    %c0_i32_0 = arith.constant 0 : i32
    return %arg0, %c0_i32 : i32, i32
  }
  func.func @transform_1(%arg0: i32) -> (i32, i32) {
    %c0_i32 = arith.constant 0 : i32
    %c0_i32_0 = arith.constant 0 : i32
    %c0_i32_1 = arith.constant 0 : i32
    return %c0_i32, %c0_i32_0 : i32, i32
  }
  func.func @transform_2(%arg0: i32) -> (i32, i32) {
    %c0_i32 = arith.constant 0 : i32
    %c0_i32_0 = arith.constant 0 : i32
    return %arg0, %c0_i32 : i32, i32
  }
}

</mosaic_0001>

<llo_original>
// kernel: tpu_custom_call.1
$region0: #{tpu_custom_call.1}
  #allocation0 [shape = 'u32[]', space=smem, size = 0x4, offset = 0x4, fixed_abs, tag = 'smem constant byte address 0x4 - core index']
  #allocation1 [shape = 'u32[72,128]{1,0:T(1,128)}', space=vmem, size = 0x9000, scoped, tag = 'internal scratch']
  %s0 = inlined_call_operand.vmem [shape: f32[16,128], index: 0, kind: input, shape index: {}]
  %s1 = inlined_call_operand.vmem [shape: f32[128,32], index: 1, kind: input, shape index: {}]
  %s2 = inlined_call_operand.hbm [shape: f32[16,32], index: 2, kind: output, shape index: {}]
  %s3 = sld [smem:[#allocation0]]
  $region41: #{tpu_custom_call.1} parent=0
    _
  %s5 = ssub.s32 1, %s3
  %s6 = scalar_select 0, %s5, %s3
  $region1: #{tpu_custom_call.1} parent=0
    #allocation2 [shape = 'u8[8192]{0}', space=vmem, size = 0x2000, scoped, tag = 'output window, operand 0']
    #allocation3 [shape = 's32[2]{0}', space=sflag, size = 0x8, scoped, tag = 'scoped memory for tpu_custom_call.1']
    %7 = vsyncpa [#allocation3], 0
    %s8 = scalar_lea.sflag [#allocation3], 1
    %9 = vsyncpa %s8, 0
    loop: start=0, step=1, limit=4
    $region2: #{tpu_custom_call.1} parent=1 // loop_pre_header
      _
    $region3: #{tpu_custom_call.1} parent=1 // loop_header
      %s11 = sphi 0, %s15
      %p12 = scmp.ge.s32.totalorder %s11, 4
      %s21 = sphi 0, %s23
      %s24 = sphi 0, %s21
      %s25 = sphi 0, %s24
      %s41 = sphi 0, %s25
      %s45 = sphi 0, %s45
      %s47 = sphi 0, %s45
      %s48 = sphi 0, %s47
      %s62 = sphi 0, %s48
      %s68 = sphi 0, %s70
      %s71 = sphi 0, %s68
      %s72 = sphi 0, %s71
      %s88 = sphi 0, %s72
    $region4: #{tpu_custom_call.1} parent=1 // loop_header_branch
      %14 = sbr.rel (%p12) target = $region8
    $region5: #{tpu_custom_call.1} parent=1 // loop_body
      %s16 = ssub.s32 %s11, 1
      %s17 = ssub.s32 %s11, 2
      %s18 = sadd.s32 %s11, 1
      %s19 = ssub.s32 %s11, %s18
      %p20 = scmp.eq.s32.totalorder %s19, 0
      %s22 = sadd.s32 %s21, 1
      %s23 = scalar_select %p20, %s21, %s22
      %p26 = pneg %p20
      %p27 = scmp.eq.s32.totalorder %s11, 1
      %p28 = por %p26, %p27
      %p29 = scmp.ne.s32.totalorder %s21, %s24
      %p30 = scmp.eq.s32.totalorder %s11, 0
      %p31 = por %p29, %p30
      %p32 = scmp.ne.s32.totalorder %s21, %s24
      %p33 = scmp.eq.s32.totalorder %s16, 1
      %p34 = por %p32, %p33
      %p35 = scmp.ne.s32.totalorder %s24, %s25
      %p36 = scmp.eq.s32.totalorder %s16, 0
      %p37 = por %p35, %p36
      %p38 = scmp.ne.s32.totalorder %s24, %s25
      %p39 = scmp.eq.s32.totalorder %s17, 1
      %p40 = por %p38, %p39
      %p42 = scmp.ne.s32.totalorder %s25, %s41
      %p43 = scmp.eq.s32.totalorder %s17, 0
      %p44 = por %p42, %p43
      %s46 = sadd.s32 %s45, 1
      %p49 = scmp.eq.s32.totalorder %s11, 1
      %p50 = scmp.ne.s32.totalorder %s45, %s47
      %p51 = scmp.eq.s32.totalorder %s11, 0
      %p52 = por %p50, %p51
      %p53 = scmp.ne.s32.totalorder %s45, %s47
      %p54 = scmp.eq.s32.totalorder %s16, 1
      %p55 = por %p53, %p54
      %p56 = scmp.ne.s32.totalorder %s47, %s48
      %p57 = scmp.eq.s32.totalorder %s16, 0
      %p58 = por %p56, %p57
      %p59 = scmp.ne.s32.totalorder %s47, %s48
      %p60 = scmp.eq.s32.totalorder %s17, 1
      %p61 = por %p59, %p60
      %p63 = scmp.ne.s32.totalorder %s48, %s62
      %p64 = scmp.eq.s32.totalorder %s17, 0
      %p65 = por %p63, %p64
      %s66 = ssub.s32 %s11, %s18
      %p67 = scmp.eq.s32.totalorder %s66, 0
      %s69 = sadd.s32 %s68, 1
      %s70 = scalar_select %p67, %s68, %s69
      %p73 = pneg %p67
      %p74 = scmp.eq.s32.totalorder %s11, 1
      %p75 = por %p73, %p74
      %p76 = scmp.ne.s32.totalorder %s68, %s71
      %p77 = scmp.eq.s32.totalorder %s11, 0
      %p78 = por %p76, %p77
      %p79 = scmp.ne.s32.totalorder %s68, %s71
      %p80 = scmp.eq.s32.totalorder %s16, 1
      %p81 = por %p79, %p80
      %p82 = scmp.ne.s32.totalorder %s71, %s72
      %p83 = scmp.eq.s32.totalorder %s16, 0
      %p84 = por %p82, %p83
      %p85 = scmp.ne.s32.totalorder %s71, %s72
      %p86 = scmp.eq.s32.totalorder %s17, 1
      %p87 = por %p85, %p86
      %p89 = scmp.ne.s32.totalorder %s72, %s88
      %p90 = scmp.eq.s32.totalorder %s17, 0
      %p91 = por %p89, %p90
      %p92 = scmp.le.s32.totalorder 1, %s11
      %p93 = scmp.lt.s32.totalorder %s11, 3
      %p94 = pnand %p92, %p93
      %p95 = pneg %p94
      // Predicated region
      $region9: #{tpu_custom_call.1} parent=5 // pred_check
        _
      $region10: #{tpu_custom_call.1} parent=5 // pred_check_branch
        %97 = sbr.rel (%p94) target = $region12
      $region11: #{tpu_custom_call.1} parent=5 // pred_region
        %s98 = ssub.s32 %s11, 1
        // Predicated region
        $region13: #{tpu_custom_call.1} parent=11 // pred_check
          %p99 = pneg %p58
        $region14: #{tpu_custom_call.1} parent=11 // pred_check_branch
          %101 = sbr.rel (%p99) target = $region16
        $region15: #{tpu_custom_call.1} parent=11 // pred_region
          _
        $region16: #{tpu_custom_call.1} parent=11 // pred_fallthru
          _
      $region12: #{tpu_custom_call.1} parent=5 // pred_fallthru
        _
      %p102 = scmp.lt.s32.totalorder %s11, 2
      // Predicated region
      $region17: #{tpu_custom_call.1} parent=5 // pred_check
        %p103 = pneg %p102
      $region18: #{tpu_custom_call.1} parent=5 // pred_check_branch
        %105 = sbr.rel (%p103) target = $region20
      $region19: #{tpu_custom_call.1} parent=5 // pred_region
        // Predicated region
        $region21: #{tpu_custom_call.1} parent=19 // pred_check
          %p106 = pneg %p31
        $region22: #{tpu_custom_call.1} parent=19 // pred_check_branch
          %108 = sbr.rel (%p106) target = $region24
        $region23: #{tpu_custom_call.1} parent=19 // pred_region
          %p109 = scmp.lt.s32.totalorder %s11, 1
          %s110 = scalar_select %p109, %s11, 1
          %s111 = smul.addr %s110, 8
          %s112 = scalar_lea.vmem %s0, %s111
        $region24: #{tpu_custom_call.1} parent=19 // pred_fallthru
          _
      $region20: #{tpu_custom_call.1} parent=5 // pred_fallthru
        _
      %p113 = scmp.le.s32.totalorder 1, %s11
      %p114 = scmp.lt.s32.totalorder %s11, 3
      %p115 = pnand %p113, %p114
      %p116 = pneg %p115
      // Predicated region
      $region25: #{tpu_custom_call.1} parent=5 // pred_check
        _
      $region26: #{tpu_custom_call.1} parent=5 // pred_check_branch
        %118 = sbr.rel (%p115) target = $region28
      $region27: #{tpu_custom_call.1} parent=5 // pred_region
        %s119 = ssub.s32 %s11, 1
        %p120 = scmp.lt.s32.totalorder %s16, 1
        %s121 = scalar_select %p120, %s16, 1
        %s122 = smul.addr %s121, 8
        %s123 = scalar_lea.vmem %s0, %s122
        %p124 = pneg %p37
        %p125 = pneg %p34
        %p126 = pneg %p58
        %p127 = pneg %p55
        %p128 = pneg %p84
        %p129 = pneg %p81
        %s130 = sand.u32 %s71, 1
        %s131 = scalar_lea.sflag [#allocation3], %s130
        %s132 = sand.u32 %s71, 1
        %s133 = smul.addr %s132, 8
        %s134 = scalar_lea.vmem [#allocation2], %s133
        %p135 = scmp.lt.s32.totalorder %s16, 1
        %s136 = scalar_select %p135, %s16, 1
        %s137 = smul.addr %s136, 8
        %s138 = scalar_lea.vmem %s0, %s137
        %v139 = vld [vmem:[%s138] sm:$0xff]
        %v140 = vld [vmem:[%s1] sm:$0xff]
        %v141 = vld [vmem:[%s1 + $0x8] sm:$0xff]
        %v142 = vld [vmem:[%s1 + $0x10] sm:$0xff]
        %v143 = vld [vmem:[%s1 + $0x18] sm:$0xff]
        %v144 = vld [vmem:[%s1 + $0x20] sm:$0xff]
        %v145 = vld [vmem:[%s1 + $0x28] sm:$0xff]
        %v146 = vld [vmem:[%s1 + $0x30] sm:$0xff]
        %v147 = vld [vmem:[%s1 + $0x38] sm:$0xff]
        %v148 = vld [vmem:[%s1 + $0x40] sm:$0xff]
        %v149 = vld [vmem:[%s1 + $0x48] sm:$0xff]
        %v150 = vld [vmem:[%s1 + $0x50] sm:$0xff]
        %v151 = vld [vmem:[%s1 + $0x58] sm:$0xff]
        %v152 = vld [vmem:[%s1 + $0x60] sm:$0xff]
        %v153 = vld [vmem:[%s1 + $0x68] sm:$0xff]
        %v154 = vld [vmem:[%s1 + $0x70] sm:$0xff]
        %v155 = vld [vmem:[%s1 + $0x78] sm:$0xff]
        %156 = vmatpush.msra.mxu0 %v155
        %157 = vmatpush.msra.mxu0 %v154
        %158 = vmatpush.msra.mxu0 %v153
        %159 = vmatpush.msra.mxu0 %v152
        %160 = vmatpush.msra.mxu0 %v151
        %161 = vmatpush.msra.mxu0 %v150
        %162 = vmatpush.msra.mxu0 %v149
        %163 = vmatpush.msra.mxu0 %v148
        %164 = vmatpush.msra.mxu0 %v147
        %165 = vmatpush.msra.mxu0 %v146
        %166 = vmatpush.msra.mxu0 %v145
        %167 = vmatpush.msra.mxu0 %v144
        %168 = vmatpush.msra.mxu0 %v143
        %169 = vmatpush.msra.mxu0 %v142
        %170 = vmatpush.msra.mxu0 %v141
        %171 = vmatpush.msra.mxu0 %v140
        %172 = vmatmul.f32.gmra.mxu0 %v139
        %v173 = vpop.f32.mrf.mxu0
        %v174 = vadd.f32 0.0, %v173
        %175 = vdwg.mxu0
        %vm176 = vcmask 261120
        %177 = vst.msk [vmem:[%s134] sm:$0xff] %vm176, %v174
        %s178 = sand.u32 %s71, 1
        %s179 = scalar_lea.sflag [#allocation3], %s178
        %s180 = sand.u32 %s71, 1
        %s181 = smul.addr %s180, 8
        %s182 = scalar_lea.vmem [#allocation2], %s181
        // Predicated region
        $region29: #{tpu_custom_call.1} parent=27 // pred_check
          %p183 = pneg %p81
        $region30: #{tpu_custom_call.1} parent=27 // pred_check_branch
          %185 = sbr.rel (%p183) target = $region32
        $region31: #{tpu_custom_call.1} parent=27 // pred_region
          %187 = vsyncadd %s179, 0
          %s188 = smul.addr %s16, 8
          %s189 = scalar_lea.hbm %s2, %s188
          %s191 = sshll.u32 %s182, 4
          %s192 = int_to_ptr.vmem [resolvable:$true] %s191
          %s193 = sshll.u32 %s189, 4
          %s194 = int_to_ptr.hbm [resolvable:$true] %s193
          %196 = dma.vmem_to_hbm [thread:$0]  %s192, 128, %s194, %s179
        $region32: #{tpu_custom_call.1} parent=27 // pred_fallthru
          _
      $region28: #{tpu_custom_call.1} parent=5 // pred_fallthru
        _
      %p197 = scmp.le.s32.totalorder 2, %s11
      // Predicated region
      $region33: #{tpu_custom_call.1} parent=5 // pred_check
        %p198 = pneg %p197
      $region34: #{tpu_custom_call.1} parent=5 // pred_check_branch
        %200 = sbr.rel (%p198) target = $region36
      $region35: #{tpu_custom_call.1} parent=5 // pred_region
        %s201 = ssub.s32 %s11, 2
        // Predicated region
        $region37: #{tpu_custom_call.1} parent=35 // pred_check
          %p202 = pneg %p87
        $region38: #{tpu_custom_call.1} parent=35 // pred_check_branch
          %204 = sbr.rel (%p202) target = $region40
        $region39: #{tpu_custom_call.1} parent=35 // pred_region
          %s205 = sand.u32 %s72, 1
          %s206 = scalar_lea.sflag [#allocation3], %s205
          %s207 = sand.u32 %s72, 1
          %s208 = smul.addr %s207, 8
          %s209 = scalar_lea.vmem [#allocation2], %s208
          %211 = dma.done %s206, 128
        $region40: #{tpu_custom_call.1} parent=35 // pred_fallthru
          _
      $region36: #{tpu_custom_call.1} parent=5 // pred_fallthru
        _
    $region6: #{tpu_custom_call.1} parent=1 // loop_footer
      %s15 = sadd.s32 1, %s11
    $region7: #{tpu_custom_call.1} parent=1 // loop_footer_branch
      %10 = sbr.rel target = $region3
    $region8: #{tpu_custom_call.1} parent=1 // loop_exit
      _
    %212 = vsyncpa [#allocation3], 1
    %s213 = scalar_lea.sflag [#allocation3], 1
    %214 = vsyncpa %s213, 1

</llo_original>
